<compile_context>
chip_gen: v7x
topology: tpu7x:2x2x1
jax: 0.10.0
libtpu: 0.0.40
codegen_flags: <defaults>
</compile_context>

<pallas_src>
import functools

import jax
import jax.numpy as jnp
from jax.experimental import pallas as pl
from jax.experimental.pallas import tpu as pltpu


def _fused_mlp_kernel(*refs, num_layers):
    """Whole-MLP forward for one batch-row tile.

    refs = (x_ref, w0, scale0, shift0, w1, scale1, shift1, ..., o_ref)
    Each layer: h = (h @ w) * scale + shift  [+ ReLU for hidden layers].
    Linear bias + eval-mode BatchNorm are folded into (scale, shift).
    """
    x_ref = refs[0]
    o_ref = refs[-1]

    h = x_ref[...].astype(jnp.float32)
    for l in range(num_layers):
        w_ref = refs[1 + 3 * l]
        scale_ref = refs[2 + 3 * l]
        shift_ref = refs[3 + 3 * l]
        # bf16 MXU operands, f32 accumulation.
        acc = jnp.dot(h.astype(w_ref.dtype), w_ref[...],
                      preferred_element_type=jnp.float32)
        h = acc * scale_ref[...] + shift_ref[...]
        if l < num_layers - 1:
            h = jnp.maximum(h, 0.0)          # ReLU on hidden layers only
    o_ref[...] = h.astype(o_ref.dtype)


def mlp_forward(x, layers, *, tm_target=256, vmem_budget_bytes=24 << 20):
    """Run the whole fused MLP in one pallas_call.

    x:      (B, Cin) float32
    layers: list of dicts {w: (Cin_l, Cout_l) bf16, scale/shift: (1, Cout_l) f32}
    """
    B, Cin = x.shape
    num_layers = len(layers)
    assert layers[0]["w"].shape[0] == Cin
    Cout_last = layers[-1]["w"].shape[1]

    # Batch-row tile: full batch if small; otherwise 256-row tiles (mult. of 8).
    tm = B if B <= tm_target else tm_target
    grid = (pl.cdiv(B, tm),)

    inputs = [x]
    in_specs = [pl.BlockSpec((tm, Cin), lambda i: (i, 0))]
    flops = 0
    bytes_accessed = x.size * x.dtype.itemsize + B * Cout_last * x.dtype.itemsize
    for layer in layers:
        w, s, sh = layer["w"], layer["scale"], layer["shift"]
        cin_l, cout_l = w.shape
        inputs += [w, s, sh]
        in_specs += [
            pl.BlockSpec((cin_l, cout_l), lambda i: (0, 0)),  # full weight
            pl.BlockSpec((1, cout_l), lambda i: (0, 0)),      # scale
            pl.BlockSpec((1, cout_l), lambda i: (0, 0)),      # shift
        ]
        flops += 2 * B * cin_l * cout_l + 3 * B * cout_l
        bytes_accessed += (w.size * w.dtype.itemsize
                           + s.size * s.dtype.itemsize
                           + sh.size * sh.dtype.itemsize)

    # Rough resident-VMEM estimate (double-buffered inputs + output tile).
    resident = 2 * sum(a.size * a.dtype.itemsize for a in inputs[1:])
    resident += 2 * (tm * Cin + tm * Cout_last) * x.dtype.itemsize
    if resident > vmem_budget_bytes:
        # TODO(synk): fall back to a per-layer K-tiled matmul pipeline for MLPs
        # whose weights do not fit in VMEM.
        raise NotImplementedError("MLP weights too large for fused VMEM kernel")

    cost = pl.CostEstimate(flops=flops, transcendentals=0,
                           bytes_accessed=bytes_accessed)

    kernel = functools.partial(_fused_mlp_kernel, num_layers=num_layers)

    return pl.pallas_call(
        kernel,
        out_shape=jax.ShapeDtypeStruct((B, Cout_last), x.dtype),
        grid_spec=pltpu.PrefetchScalarGridSpec(
            num_scalar_prefetch=0,
            grid=grid,
            in_specs=in_specs,
            out_specs=pl.BlockSpec((tm, Cout_last), lambda i: (i, 0)),
        ),
        compiler_params=pltpu.CompilerParams(
            dimension_semantics=("parallel",)),
        cost_estimate=cost,
    )(*inputs)


def build_fused_layers(raw_layers, eps=1e-5):
    """Fold Linear bias + eval-mode BatchNorm into per-feature scale/shift.

    Hidden layer l (followed by BN + ReLU before the next Linear):
        y = (x @ w + b - mean) / sqrt(var + eps) * gamma + beta
          = (x @ w) * s + (b * s + beta - mean * s),   s = gamma / sqrt(var+eps)
    Last layer: plain Linear (scale = 1, shift = b).
    Weights are stored in bf16 for the MXU; scale/shift stay f32.
    """
    fused = []
    n = len(raw_layers)
    for idx, p in enumerate(raw_layers):
        w, b = p["w"], p["b"]
        cout = w.shape[1]
        if idx < n - 1:
            inv_std = 1.0 / jnp.sqrt(p["var"] + eps)
            s = p["gamma"] * inv_std
            shift = b * s + (p["beta"] - p["mean"] * s)
        else:
            s = jnp.ones((cout,), jnp.float32)
            shift = b
        fused.append({
            "w": w.astype(jnp.bfloat16),
            "scale": s.reshape(1, cout).astype(jnp.float32),
            "shift": shift.reshape(1, cout).astype(jnp.float32),
        })
    return fused


def mlp_reference(x, raw_layers, eps=1e-5):
    """Plain-JAX f32 reference matching the PyTorch MLP forward (eval mode)."""
    h = x
    n = len(raw_layers)
    for idx, p in enumerate(raw_layers):
        y = h @ p["w"] + p["b"]
        if idx < n - 1:
            y = (y - p["mean"]) / jnp.sqrt(p["var"] + eps) * p["gamma"] + p["beta"]
            y = jnp.maximum(y, 0.0)
            # dropout p=0.0 -> identity
        h = y
    return h


def mlp_reference_matched(x, fused_layers):
    """Matched-precision reference (bf16 operands, f32 accumulation)."""
    h = x.astype(jnp.float32)
    n = len(fused_layers)
    for idx, p in enumerate(fused_layers):
        acc = jnp.dot(h.astype(jnp.bfloat16), p["w"],
                      preferred_element_type=jnp.float32)
        h = acc * p["scale"] + p["shift"]
        if idx < n - 1:
            h = jnp.maximum(h, 0.0)
    return h


if __name__ == "__main__":
    # MLP([16, 32, 64, 128]) from the module docstring, batch of 64 rows.
    channel_list = [16, 32, 64, 128]
    B = 64

    key = jax.random.PRNGKey(0)
    raw_layers = []
    for cin, cout in zip(channel_list[:-1], channel_list[1:]):
        key, kw, kb, kg, kbe, km, kv = jax.random.split(key, 7)
        raw_layers.append({
            "w": jax.random.normal(kw, (cin, cout), jnp.float32)
                 * (1.0 / jnp.sqrt(cin)),
            "b": jax.random.normal(kb, (cout,), jnp.float32) * 0.1,
            # eval-mode BatchNorm parameters / running statistics
            "gamma": 1.0 + 0.1 * jax.random.normal(kg, (cout,), jnp.float32),
            "beta": 0.1 * jax.random.normal(kbe, (cout,), jnp.float32),
            "mean": 0.1 * jax.random.normal(km, (cout,), jnp.float32),
            "var": jax.random.uniform(kv, (cout,), jnp.float32,
                                      minval=0.5, maxval=1.5),
        })

    key, kx = jax.random.split(key)
    x = jax.random.normal(kx, (B, channel_list[0]), jnp.float32)

    fused_layers = build_fused_layers(raw_layers)

    out = mlp_forward(x, fused_layers)
    out = jax.block_until_ready(out)
    assert out.shape == (B, channel_list[-1]), out.shape

    # Tight check vs matched-precision (bf16-operand) reference.
    ref_matched = mlp_reference_matched(x, fused_layers)
    assert jnp.allclose(out, ref_matched, atol=1e-3, rtol=1e-3), (
        float(jnp.max(jnp.abs(out - ref_matched))))

    # Loose check vs full-f32 PyTorch-semantics reference (bf16 rounding).
    ref_f32 = mlp_reference(x, raw_layers)
    assert jnp.allclose(out, ref_f32, atol=5e-2, rtol=5e-2), (
        float(jnp.max(jnp.abs(out - ref_f32))))

    print("KERNEL_OK")
</pallas_src>

<mosaic_0001>
module attributes {stable_mosaic.version = 11 : i64} {
  func.func @_fused_mlp_kernel(%arg0: i32, %arg1: memref<64x16xf32, #tpu.memory_space<vmem>>, %arg2: memref<16x32xbf16, #tpu.memory_space<vmem>>, %arg3: memref<1x32xf32, #tpu.memory_space<vmem>>, %arg4: memref<1x32xf32, #tpu.memory_space<vmem>>, %arg5: memref<32x64xbf16, #tpu.memory_space<vmem>>, %arg6: memref<1x64xf32, #tpu.memory_space<vmem>>, %arg7: memref<1x64xf32, #tpu.memory_space<vmem>>, %arg8: memref<64x128xbf16, #tpu.memory_space<vmem>>, %arg9: memref<1x128xf32, #tpu.memory_space<vmem>>, %arg10: memref<1x128xf32, #tpu.memory_space<vmem>>, %arg11: memref<64x128xf32, #tpu.memory_space<vmem>>) attributes {dimension_semantics = [#tpu.dimension_semantics<parallel>], iteration_bounds = array<i64: 1>, scalar_prefetch = 0 : i64, scratch_operands = 0 : i64, tpu.core_type = #tpu.core_type<tc>, window_params = [{transform_indices = @transform_0, window_bounds = array<i64: 64, 16>}, {pipeline_mode = #tpu.pipeline_mode<synchronous>, transform_indices = @transform_1, window_bounds = array<i64: 16, 32>}, {pipeline_mode = #tpu.pipeline_mode<synchronous>, transform_indices = @transform_2, window_bounds = array<i64: 1, 32>}, {pipeline_mode = #tpu.pipeline_mode<synchronous>, transform_indices = @transform_3, window_bounds = array<i64: 1, 32>}, {pipeline_mode = #tpu.pipeline_mode<synchronous>, transform_indices = @transform_4, window_bounds = array<i64: 32, 64>}, {pipeline_mode = #tpu.pipeline_mode<synchronous>, transform_indices = @transform_5, window_bounds = array<i64: 1, 64>}, {pipeline_mode = #tpu.pipeline_mode<synchronous>, transform_indices = @transform_6, window_bounds = array<i64: 1, 64>}, {pipeline_mode = #tpu.pipeline_mode<synchronous>, transform_indices = @transform_7, window_bounds = array<i64: 64, 128>}, {pipeline_mode = #tpu.pipeline_mode<synchronous>, transform_indices = @transform_8, window_bounds = array<i64: 1, 128>}, {pipeline_mode = #tpu.pipeline_mode<synchronous>, transform_indices = @transform_9, window_bounds = array<i64: 1, 128>}, {transform_indices = @transform_10, window_bounds = array<i64: 64, 128>}]} {
    %c0 = arith.constant 0 : index
    %c0_0 = arith.constant 0 : index
    %0 = vector.load %arg1[%c0, %c0_0] : memref<64x16xf32, #tpu.memory_space<vmem>>, vector<64x16xf32>
    %1 = arith.truncf %0 : vector<64x16xf32> to vector<64x16xbf16>
    %c0_1 = arith.constant 0 : index
    %c0_2 = arith.constant 0 : index
    %2 = vector.load %arg2[%c0_1, %c0_2] : memref<16x32xbf16, #tpu.memory_space<vmem>>, vector<16x32xbf16>
    %cst = arith.constant dense<0.000000e+00> : vector<64x32xf32>
    %3 = tpu.matmul %1, %2, %cst {dimension_numbers = #tpu.dot_dimension_numbers<[1], [0], [0], [1], [0, 0, 1, 1], [], []>} : vector<64x16xbf16>, vector<16x32xbf16>, vector<64x32xf32> -> vector<64x32xf32>
    %c0_3 = arith.constant 0 : index
    %c0_4 = arith.constant 0 : index
    %4 = vector.load %arg3[%c0_3, %c0_4] : memref<1x32xf32, #tpu.memory_space<vmem>>, vector<1x32xf32>
    %5 = vector.broadcast %4 : vector<1x32xf32> to vector<64x32xf32>
    %6 = arith.mulf %3, %5 : vector<64x32xf32>
    %c0_5 = arith.constant 0 : index
    %c0_6 = arith.constant 0 : index
    %7 = vector.load %arg4[%c0_5, %c0_6] : memref<1x32xf32, #tpu.memory_space<vmem>>, vector<1x32xf32>
    %8 = vector.broadcast %7 : vector<1x32xf32> to vector<64x32xf32>
    %9 = arith.addf %6, %8 : vector<64x32xf32>
    %cst_7 = arith.constant 0.000000e+00 : f32
    %10 = vector.broadcast %cst_7 : f32 to vector<64x32xf32>
    %11 = arith.maximumf %9, %10 : vector<64x32xf32>
    %12 = arith.truncf %11 : vector<64x32xf32> to vector<64x32xbf16>
    %c0_8 = arith.constant 0 : index
    %c0_9 = arith.constant 0 : index
    %13 = vector.load %arg5[%c0_8, %c0_9] : memref<32x64xbf16, #tpu.memory_space<vmem>>, vector<32x64xbf16>
    %cst_10 = arith.constant dense<0.000000e+00> : vector<64x64xf32>
    %14 = tpu.matmul %12, %13, %cst_10 {dimension_numbers = #tpu.dot_dimension_numbers<[1], [0], [0], [1], [0, 0, 1, 1], [], []>} : vector<64x32xbf16>, vector<32x64xbf16>, vector<64x64xf32> -> vector<64x64xf32>
    %c0_11 = arith.constant 0 : index
    %c0_12 = arith.constant 0 : index
    %15 = vector.load %arg6[%c0_11, %c0_12] : memref<1x64xf32, #tpu.memory_space<vmem>>, vector<1x64xf32>
    %16 = vector.broadcast %15 : vector<1x64xf32> to vector<64x64xf32>
    %17 = arith.mulf %14, %16 : vector<64x64xf32>
    %c0_13 = arith.constant 0 : index
    %c0_14 = arith.constant 0 : index
    %18 = vector.load %arg7[%c0_13, %c0_14] : memref<1x64xf32, #tpu.memory_space<vmem>>, vector<1x64xf32>
    %19 = vector.broadcast %18 : vector<1x64xf32> to vector<64x64xf32>
    %20 = arith.addf %17, %19 : vector<64x64xf32>
    %cst_15 = arith.constant 0.000000e+00 : f32
    %21 = vector.broadcast %cst_15 : f32 to vector<64x64xf32>
    %22 = arith.maximumf %20, %21 : vector<64x64xf32>
    %23 = arith.truncf %22 : vector<64x64xf32> to vector<64x64xbf16>
    %c0_16 = arith.constant 0 : index
    %c0_17 = arith.constant 0 : index
    %24 = vector.load %arg8[%c0_16, %c0_17] : memref<64x128xbf16, #tpu.memory_space<vmem>>, vector<64x128xbf16>
    %cst_18 = arith.constant dense<0.000000e+00> : vector<64x128xf32>
    %25 = tpu.matmul %23, %24, %cst_18 {dimension_numbers = #tpu.dot_dimension_numbers<[1], [0], [0], [1], [0, 0, 1, 1], [], []>} : vector<64x64xbf16>, vector<64x128xbf16>, vector<64x128xf32> -> vector<64x128xf32>
    %c0_19 = arith.constant 0 : index
    %c0_20 = arith.constant 0 : index
    %26 = vector.load %arg9[%c0_19, %c0_20] : memref<1x128xf32, #tpu.memory_space<vmem>>, vector<1x128xf32>
    %27 = vector.broadcast %26 : vector<1x128xf32> to vector<64x128xf32>
    %28 = arith.mulf %25, %27 : vector<64x128xf32>
    %c0_21 = arith.constant 0 : index
    %c0_22 = arith.constant 0 : index
    %29 = vector.load %arg10[%c0_21, %c0_22] : memref<1x128xf32, #tpu.memory_space<vmem>>, vector<1x128xf32>
    %30 = vector.broadcast %29 : vector<1x128xf32> to vector<64x128xf32>
    %31 = arith.addf %28, %30 : vector<64x128xf32>
    %c0_23 = arith.constant 0 : index
    %c0_24 = arith.constant 0 : index
    %32 = vector.load %arg11[%c0_23, %c0_24] : memref<64x128xf32, #tpu.memory_space<vmem>>, vector<64x128xf32>
    tpu.vector_store %arg11[%c0_23, %c0_24], %31 {strides = array<i32>} : memref<64x128xf32, #tpu.memory_space<vmem>>, vector<64x128xf32>,
    return
  }
  func.func @transform_0(%arg0: i32) -> (i32, i32) {
    %c0_i32 = arith.constant 0 : i32
    %c0_i32_0 = arith.constant 0 : i32
    return %arg0, %c0_i32 : i32, i32
  }
  func.func @transform_1(%arg0: i32) -> (i32, i32) {
    %c0_i32 = arith.constant 0 : i32
    %c0_i32_0 = arith.constant 0 : i32
    %c0_i32_1 = arith.constant 0 : i32
    return %c0_i32, %c0_i32_0 : i32, i32
  }
  func.func @transform_2(%arg0: i32) -> (i32, i32) {
    %c0_i32 = arith.constant 0 : i32
    %c0_i32_0 = arith.constant 0 : i32
    %c0_i32_1 = arith.constant 0 : i32
    return %c0_i32, %c0_i32_0 : i32, i32
  }
  func.func @transform_3(%arg0: i32) -> (i32, i32) {
    %c0_i32 = arith.constant 0 : i32
    %c0_i32_0 = arith.constant 0 : i32
    %c0_i32_1 = arith.constant 0 : i32
    return %c0_i32, %c0_i32_0 : i32, i32
  }
  func.func @transform_4(%arg0: i32) -> (i32, i32) {
    %c0_i32 = arith.constant 0 : i32
    %c0_i32_0 = arith.constant 0 : i32
    %c0_i32_1 = arith.constant 0 : i32
    return %c0_i32, %c0_i32_0 : i32, i32
  }
  func.func @transform_5(%arg0: i32) -> (i32, i32) {
    %c0_i32 = arith.constant 0 : i32
    %c0_i32_0 = arith.constant 0 : i32
    %c0_i32_1 = arith.constant 0 : i32
    return %c0_i32, %c0_i32_0 : i32, i32
  }
  func.func @transform_6(%arg0: i32) -> (i32, i32) {
    %c0_i32 = arith.constant 0 : i32
    %c0_i32_0 = arith.constant 0 : i32
    %c0_i32_1 = arith.constant 0 : i32
    return %c0_i32, %c0_i32_0 : i32, i32
  }
  func.func @transform_7(%arg0: i32) -> (i32, i32) {
    %c0_i32 = arith.constant 0 : i32
    %c0_i32_0 = arith.constant 0 : i32
    %c0_i32_1 = arith.constant 0 : i32
    return %c0_i32, %c0_i32_0 : i32, i32
  }
  func.func @transform_8(%arg0: i32) -> (i32, i32) {
    %c0_i32 = arith.constant 0 : i32
    %c0_i32_0 = arith.constant 0 : i32
    %c0_i32_1 = arith.constant 0 : i32
    return %c0_i32, %c0_i32_0 : i32, i32
  }
  func.func @transform_9(%arg0: i32) -> (i32, i32) {
    %c0_i32 = arith.constant 0 : i32
    %c0_i32_0 = arith.constant 0 : i32
    %c0_i32_1 = arith.constant 0 : i32
    return %c0_i32, %c0_i32_0 : i32, i32
  }
  func.func @transform_10(%arg0: i32) -> (i32, i32) {
    %c0_i32 = arith.constant 0 : i32
    %c0_i32_0 = arith.constant 0 : i32
    return %arg0, %c0_i32 : i32, i32
  }
}

</mosaic_0001>

<llo_original>
// kernel: tpu_custom_call.1
$region0: #{tpu_custom_call.1}
  #allocation0 [shape = 'u32[]', space=smem, size = 0x4, offset = 0x4, fixed_abs, tag = 'smem constant byte address 0x4 - core index']
  #allocation1 [shape = 'u32[144,128]{1,0:T(1,128)}', space=vmem, size = 0x12000, scoped, tag = 'internal scratch']
  %s0 = inlined_call_operand.vmem [shape: f32[64,16], index: 0, kind: input, shape index: {}]
  %s1 = inlined_call_operand.vmem [shape: bf16[16,32], index: 1, kind: input, shape index: {}]
  %s2 = inlined_call_operand.vmem [shape: f32[1,32], index: 2, kind: input, shape index: {}]
  %s3 = inlined_call_operand.vmem [shape: f32[1,32], index: 3, kind: input, shape index: {}]
  %s4 = inlined_call_operand.vmem [shape: bf16[32,64], index: 4, kind: input, shape index: {}]
  %s5 = inlined_call_operand.vmem [shape: f32[1,64], index: 5, kind: input, shape index: {}]
  %s6 = inlined_call_operand.vmem [shape: f32[1,64], index: 6, kind: input, shape index: {}]
  %s7 = inlined_call_operand.vmem [shape: bf16[64,128], index: 7, kind: input, shape index: {}]
  %s8 = inlined_call_operand.vmem [shape: f32[1,128], index: 8, kind: input, shape index: {}]
  %s9 = inlined_call_operand.vmem [shape: f32[1,128], index: 9, kind: input, shape index: {}]
  %s10 = inlined_call_operand.hbm [shape: f32[64,128], index: 10, kind: output, shape index: {}]
  %s11 = sld [smem:[#allocation0]]
  $region50: #{tpu_custom_call.1} parent=0
    _
  %s13 = ssub.s32 1, %s11
  %s14 = scalar_select 0, %s13, %s11
  $region1: #{tpu_custom_call.1} parent=0
    #allocation2 [shape = 'u8[32768]{0}', space=vmem, size = 0x8000, scoped, tag = 'output window, operand 0, single buffered']
    #allocation3 [shape = 's32[1]{0}', space=sflag, size = 0x4, scoped, tag = 'scoped memory for tpu_custom_call.1']
    %15 = vsyncpa [#allocation3], 0
    // Predicated region
    $region2: #{tpu_custom_call.1} parent=1 // pred_check
      _
    $region3: #{tpu_custom_call.1} parent=1 // pred_check_branch
      %17 = sbr.rel (0) target = $region5
    $region4: #{tpu_custom_call.1} parent=1 // pred_region
      _
    $region5: #{tpu_custom_call.1} parent=1 // pred_fallthru
      _
    // Predicated region
    $region6: #{tpu_custom_call.1} parent=1 // pred_check
      _
    $region7: #{tpu_custom_call.1} parent=1 // pred_check_branch
      %19 = sbr.rel (0) target = $region9
    $region8: #{tpu_custom_call.1} parent=1 // pred_region
      _
    $region9: #{tpu_custom_call.1} parent=1 // pred_fallthru
      _
    // Predicated region
    $region10: #{tpu_custom_call.1} parent=1 // pred_check
      _
    $region11: #{tpu_custom_call.1} parent=1 // pred_check_branch
      %21 = sbr.rel (0) target = $region13
    $region12: #{tpu_custom_call.1} parent=1 // pred_region
      _
    $region13: #{tpu_custom_call.1} parent=1 // pred_fallthru
      _
    // Predicated region
    $region14: #{tpu_custom_call.1} parent=1 // pred_check
      _
    $region15: #{tpu_custom_call.1} parent=1 // pred_check_branch
      %23 = sbr.rel (0) target = $region17
    $region16: #{tpu_custom_call.1} parent=1 // pred_region
      _
    $region17: #{tpu_custom_call.1} parent=1 // pred_fallthru
      _
    // Predicated region
    $region18: #{tpu_custom_call.1} parent=1 // pred_check
      _
    $region19: #{tpu_custom_call.1} parent=1 // pred_check_branch
      %25 = sbr.rel (0) target = $region21
    $region20: #{tpu_custom_call.1} parent=1 // pred_region
      _
    $region21: #{tpu_custom_call.1} parent=1 // pred_fallthru
      _
    // Predicated region
    $region22: #{tpu_custom_call.1} parent=1 // pred_check
      _
    $region23: #{tpu_custom_call.1} parent=1 // pred_check_branch
      %27 = sbr.rel (0) target = $region25
    $region24: #{tpu_custom_call.1} parent=1 // pred_region
      _
    $region25: #{tpu_custom_call.1} parent=1 // pred_fallthru
      _
    // Predicated region
    $region26: #{tpu_custom_call.1} parent=1 // pred_check
      _
    $region27: #{tpu_custom_call.1} parent=1 // pred_check_branch
      %29 = sbr.rel (0) target = $region29
    $region28: #{tpu_custom_call.1} parent=1 // pred_region
      _
    $region29: #{tpu_custom_call.1} parent=1 // pred_fallthru
      _
    // Predicated region
    $region30: #{tpu_custom_call.1} parent=1 // pred_check
      _
    $region31: #{tpu_custom_call.1} parent=1 // pred_check_branch
      %31 = sbr.rel (0) target = $region33
    $region32: #{tpu_custom_call.1} parent=1 // pred_region
      _
    $region33: #{tpu_custom_call.1} parent=1 // pred_fallthru
      _
    // Predicated region
    $region34: #{tpu_custom_call.1} parent=1 // pred_check
      _
    $region35: #{tpu_custom_call.1} parent=1 // pred_check_branch
      %33 = sbr.rel (0) target = $region37
    $region36: #{tpu_custom_call.1} parent=1 // pred_region
      _
    $region37: #{tpu_custom_call.1} parent=1 // pred_fallthru
      _
    // Predicated region
    $region38: #{tpu_custom_call.1} parent=1 // pred_check
      _
    $region39: #{tpu_custom_call.1} parent=1 // pred_check_branch
      %35 = sbr.rel (0) target = $region41
    $region40: #{tpu_custom_call.1} parent=1 // pred_region
      _
    $region41: #{tpu_custom_call.1} parent=1 // pred_fallthru
      _
    %v37 = vld [vmem:[%s0] sm:$0xff]
    %v38 = vld [vmem:[%s0 + $0x8] sm:$0xff]
    %v39 = vld [vmem:[%s0 + $0x10] sm:$0xff]
    %v40 = vld [vmem:[%s0 + $0x18] sm:$0xff]
    %v41 = vld [vmem:[%s0 + $0x20] sm:$0xff]
    %v42 = vld [vmem:[%s0 + $0x28] sm:$0xff]
    %v43 = vld [vmem:[%s0 + $0x30] sm:$0xff]
    %v44 = vld [vmem:[%s0 + $0x38] sm:$0xff]
    %v45 = vpack.c.bf16 %v38, %v37
    %v46 = vpack.c.bf16 %v40, %v39
    %v47 = vpack.c.bf16 %v42, %v41
    %v48 = vpack.c.bf16 %v44, %v43
    %v49 = vld [vmem:[%s1] sm:$0xf]
    %v50 = vld [vmem:[%s1 + $0x4] sm:$0xf]
    %v53 = vunpack.c.l.b16 %v49
    %v54 = vunpack.c.l.b16 %v50
    %v55 = vpack.c.b16 %v54, %v53
    %vm57 = vcmask 130048
    %v59 = vsel %vm57, %v45, 0
    %v62 = vsel %vm57, %v46, 0
    %v65 = vsel %vm57, %v47, 0
    %v68 = vsel %vm57, %v48, 0
    %70 = vmatprep.subr.bf16.mxu0 0
    %71 = vmatpush1.bf16.msra.mxu0 %v55
    %72 = vmatprep.subr.bf16.mxu0 0
    %73 = vmatpush1.bf16.msra.mxu0 0
    %74 = vmatprep.subr.bf16.mxu0 0
    %75 = vmatpush1.bf16.msra.mxu0 0
    %76 = vmatprep.subr.bf16.mxu0 0
    %77 = vmatpush1.bf16.msra.mxu0 0
    %78 = vmatprep.subr.bf16.mxu0 0
    %79 = vmatpush1.bf16.msra.mxu0 0
    %80 = vmatprep.subr.bf16.mxu0 0
    %81 = vmatpush1.bf16.msra.mxu0 0
    %82 = vmatprep.subr.bf16.mxu0 0
    %83 = vmatpush1.bf16.msra.mxu0 0
    %84 = vmatprep.subr.bf16.mxu0 0
    %85 = vmatpush1.bf16.msra.mxu0 0
    %86 = vmatprep.subr.bf16.mxu0 0
    %87 = vmatpush1.bf16.msra.mxu0 0
    %88 = vmatprep.subr.bf16.mxu0 0
    %89 = vmatpush1.bf16.msra.mxu0 0
    %90 = vmatprep.subr.bf16.mxu0 0
    %91 = vmatpush1.bf16.msra.mxu0 0
    %92 = vmatprep.subr.bf16.mxu0 0
    %93 = vmatpush1.bf16.msra.mxu0 0
    %94 = vmatprep.subr.bf16.mxu0 0
    %95 = vmatpush1.bf16.msra.mxu0 0
    %96 = vmatprep.subr.bf16.mxu0 0
    %97 = vmatpush1.bf16.msra.mxu0 0
    %98 = vmatprep.subr.bf16.mxu0 0
    %99 = vmatpush1.bf16.msra.mxu0 0
    %100 = vmatprep.subr.bf16.mxu0 0
    %101 = vmatpush1.bf16.msra.mxu0 0
    %102 = vmatprep.mubr.bf16.mxu0 0
    %103 = vmatmul.mubr.bf16.gmra.mrb[0].mxu0 %v59
    %v104 = vpop.f32.mrb[0].mxu0
    %v105 = vadd.f32 0.0, %v104
    %v106 = vpop.f32.mrb[0].mxu0
    %v107 = vpop.f32.mrb[0].mxu0
    %v108 = vadd.f32 0.0, %v107
    %v109 = vpop.f32.mrb[0].mxu0
    %110 = vmatprep.mubr.bf16.mxu0 0
    %111 = vmatmul.mubr.bf16.gmra.mrb[0].mxu0 %v62
    %v112 = vpop.f32.mrb[0].mxu0
    %v113 = vadd.f32 0.0, %v112
    %v114 = vpop.f32.mrb[0].mxu0
    %v115 = vpop.f32.mrb[0].mxu0
    %v116 = vadd.f32 0.0, %v115
    %v117 = vpop.f32.mrb[0].mxu0
    %118 = vmatprep.mubr.bf16.mxu0 0
    %119 = vmatmul.mubr.bf16.gmra.mrb[0].mxu0 %v65
    %v120 = vpop.f32.mrb[0].mxu0
    %v121 = vadd.f32 0.0, %v120
    %v122 = vpop.f32.mrb[0].mxu0
    %v123 = vpop.f32.mrb[0].mxu0
    %v124 = vadd.f32 0.0, %v123
    %v125 = vpop.f32.mrb[0].mxu0
    %126 = vmatprep.mubr.bf16.mxu0 0
    %127 = vmatmul.mubr.bf16.gmra.mrb[0].mxu0 %v68
    %v128 = vpop.f32.mrb[0].mxu0
    %v129 = vadd.f32 0.0, %v128
    %v130 = vpop.f32.mrb[0].mxu0
    %v131 = vpop.f32.mrb[0].mxu0
    %v132 = vadd.f32 0.0, %v131
    %v133 = vpop.f32.mrb[0].mxu0
    %134 = vdwg.mxu0
    %v135 = vld [vmem:[%s2] sm:$0x1]
    %v137 = vlaneseq
    %v138 = vshrl.u32 %v137, 7
    %v139 = vsub.s32 0, %v138
    %v140 = vrot.slane %v135, %v139
    %v142 = vmul.f32 %v105, %v140
    %v143 = vmul.f32 %v108, %v140
    %v144 = vmul.f32 %v113, %v140
    %v145 = vmul.f32 %v116, %v140
    %v146 = vmul.f32 %v121, %v140
    %v147 = vmul.f32 %v124, %v140
    %v148 = vmul.f32 %v129, %v140
    %v149 = vmul.f32 %v132, %v140
    %v150 = vld [vmem:[%s3] sm:$0x1]
    %v152 = vlaneseq
    %v153 = vshrl.u32 %v152, 7
    %v154 = vsub.s32 0, %v153
    %v155 = vrot.slane %v150, %v154
    %v157 = vadd.f32 %v142, %v155
    %v158 = vadd.f32 %v143, %v155
    %v159 = vadd.f32 %v144, %v155
    %v160 = vadd.f32 %v145, %v155
    %v161 = vadd.f32 %v146, %v155
    %v162 = vadd.f32 %v147, %v155
    %v163 = vadd.f32 %v148, %v155
    %v164 = vadd.f32 %v149, %v155
    %v165 = vmax.f32 %v157, 0.0
    %v166 = vmax.f32 %v158, 0.0
    %v167 = vmax.f32 %v159, 0.0
    %v168 = vmax.f32 %v160, 0.0
    %v169 = vmax.f32 %v161, 0.0
    %v170 = vmax.f32 %v162, 0.0
    %v171 = vmax.f32 %v163, 0.0
    %v172 = vmax.f32 %v164, 0.0
    %v173 = vpack.c.bf16 %v166, %v165
    %v174 = vpack.c.bf16 %v168, %v167
    %v175 = vpack.c.bf16 %v170, %v169
    %v176 = vpack.c.bf16 %v172, %v171
    %v177 = vld [vmem:[%s4] sm:$0xf]
    %v178 = vld [vmem:[%s4 + $0x4] sm:$0xf]
    %v179 = vld [vmem:[%s4 + $0x8] sm:$0xf]
    %v180 = vld [vmem:[%s4 + $0xc] sm:$0xf]
    %v185 = vunpack.c.l.b16 %v177
    %v186 = vunpack.c.l.b16 %v178
    %v187 = vunpack.c.l.b16 %v179
    %v188 = vunpack.c.l.b16 %v180
    %v189 = vpack.c.b16 %v186, %v185
    %v190 = vpack.c.b16 %v188, %v187
    %vm193 = vcmask 261120
    %v195 = vsel %vm193, %v173, 0
    %v198 = vsel %vm193, %v174, 0
    %v201 = vsel %vm193, %v175, 0
    %v204 = vsel %vm193, %v176, 0
    %206 = vmatprep.subr.bf16.mxu0 0
    %207 = vmatpush1.bf16.msra.mxu0 %v189
    %208 = vmatprep.subr.bf16.mxu0 0
    %209 = vmatpush1.bf16.msra.mxu0 %v190
    %210 = vmatprep.subr.bf16.mxu0 0
    %211 = vmatpush1.bf16.msra.mxu0 0
    %212 = vmatprep.subr.bf16.mxu0 0
    %213 = vmatpush1.bf16.msra.mxu0 0
    %214 = vmatprep.subr.bf16.mxu0 0
    %215 = vmatpush1.bf16.msra.mxu0 0
    %216 = vmatprep.subr.bf16.mxu0 0
    %217 = vmatpush1.bf16.msra.mxu0 0
    %218 = vmatprep.subr.bf16.mxu0 0
    %219 = vmatpush1.bf16.msra.mxu0 0
    %220 = vmatprep.subr.bf16.mxu0 0
    %221 = vmatpush1.bf16.msra.mxu0 0
    %222 = vmatprep.subr.bf16.mxu0 0
    %223 = vmatpush1.bf16.msra.mxu0 0
    %224 = vmatprep.subr.bf16.mxu0 0
    %225 = vmatpush1.bf16.msra.mxu0 0
    %226 = vmatprep.subr.bf16.mxu0 0
    %227 = vmatpush1.bf16.msra.mxu0 0
    %228 = vmatprep.subr.bf16.mxu0 0
    %229 = vmatpush1.bf16.msra.mxu0 0
    %230 = vmatprep.subr.bf16.mxu0 0
    %231 = vmatpush1.bf16.msra.mxu0 0
    %232 = vmatprep.subr.bf16.mxu0 0
    %233 = vmatpush1.bf16.msra.mxu0 0
    %234 = vmatprep.subr.bf16.mxu0 0
    %235 = vmatpush1.bf16.msra.mxu0 0
    %236 = vmatprep.subr.bf16.mxu0 0
    %237 = vmatpush1.bf16.msra.mxu0 0
    %238 = vmatprep.mubr.bf16.mxu0 0
    %239 = vmatmul.mubr.bf16.gmra.mrb[0].mxu0 %v195
    %v240 = vpop.f32.mrb[0].mxu0
    %v241 = vadd.f32 0.0, %v240
    %v242 = vpop.f32.mrb[0].mxu0
    %v243 = vpop.f32.mrb[0].mxu0
    %v244 = vadd.f32 0.0, %v243
    %v245 = vpop.f32.mrb[0].mxu0
    %246 = vmatprep.mubr.bf16.mxu0 0
    %247 = vmatmul.mubr.bf16.gmra.mrb[0].mxu0 %v198
    %v248 = vpop.f32.mrb[0].mxu0
    %v249 = vadd.f32 0.0, %v248
    %v250 = vpop.f32.mrb[0].mxu0
    %v251 = vpop.f32.mrb[0].mxu0
    %v252 = vadd.f32 0.0, %v251
    %v253 = vpop.f32.mrb[0].mxu0
    %254 = vmatprep.mubr.bf16.mxu0 0
    %255 = vmatmul.mubr.bf16.gmra.mrb[0].mxu0 %v201
    %v256 = vpop.f32.mrb[0].mxu0
    %v257 = vadd.f32 0.0, %v256
    %v258 = vpop.f32.mrb[0].mxu0
    %v259 = vpop.f32.mrb[0].mxu0
    %v260 = vadd.f32 0.0, %v259
    %v261 = vpop.f32.mrb[0].mxu0
    %262 = vmatprep.mubr.bf16.mxu0 0
    %263 = vmatmul.mubr.bf16.gmra.mrb[0].mxu0 %v204
    %v264 = vpop.f32.mrb[0].mxu0
    %v265 = vadd.f32 0.0, %v264
    %v266 = vpop.f32.mrb[0].mxu0
    %v267 = vpop.f32.mrb[0].mxu0
    %v268 = vadd.f32 0.0, %v267
    %v269 = vpop.f32.mrb[0].mxu0
    %270 = vdwg.mxu0
    %v271 = vld [vmem:[%s5] sm:$0x1]
    %v273 = vlaneseq
    %v274 = vshrl.u32 %v273, 7
    %v275 = vsub.s32 0, %v274
    %v276 = vrot.slane %v271, %v275
    %v278 = vmul.f32 %v241, %v276
    %v279 = vmul.f32 %v244, %v276
    %v280 = vmul.f32 %v249, %v276
    %v281 = vmul.f32 %v252, %v276
    %v282 = vmul.f32 %v257, %v276
    %v283 = vmul.f32 %v260, %v276
    %v284 = vmul.f32 %v265, %v276
    %v285 = vmul.f32 %v268, %v276
    %v286 = vld [vmem:[%s6] sm:$0x1]
    %v288 = vlaneseq
    %v289 = vshrl.u32 %v288, 7
    %v290 = vsub.s32 0, %v289
    %v291 = vrot.slane %v286, %v290
    %v293 = vadd.f32 %v278, %v291
    %v294 = vadd.f32 %v279, %v291
    %v295 = vadd.f32 %v280, %v291
    %v296 = vadd.f32 %v281, %v291
    %v297 = vadd.f32 %v282, %v291
    %v298 = vadd.f32 %v283, %v291
    %v299 = vadd.f32 %v284, %v291
    %v300 = vadd.f32 %v285, %v291
    %v301 = vmax.f32 %v293, 0.0
    %v302 = vmax.f32 %v294, 0.0
    %v303 = vmax.f32 %v295, 0.0
    %v304 = vmax.f32 %v296, 0.0
    %v305 = vmax.f32 %v297, 0.0
    %v306 = vmax.f32 %v298, 0.0
    %v307 = vmax.f32 %v299, 0.0
    %v308 = vmax.f32 %v300, 0.0
    %v309 = vpack.c.bf16 %v302, %v301
    %v310 = vpack.c.bf16 %v304, %v303
    %v311 = vpack.c.bf16 %v306, %v305
    %v312 = vpack.c.bf16 %v308, %v307
    %v313 = vld [vmem:[%s7] sm:$0xf]
    %v314 = vld [vmem:[%s7 + $0x4] sm:$0xf]
    %v315 = vld [vmem:[%s7 + $0x8] sm:$0xf]
    %v316 = vld [vmem:[%s7 + $0xc] sm:$0xf]
    %v317 = vld [vmem:[%s7 + $0x10] sm:$0xf]
    %v318 = vld [vmem:[%s7 + $0x14] sm:$0xf]
    %v319 = vld [vmem:[%s7 + $0x18] sm:$0xf]
    %v320 = vld [vmem:[%s7 + $0x1c] sm:$0xf]
    %v329 = vunpack.c.l.b16 %v313
    %v330 = vunpack.c.l.b16 %v314
    %v331 = vunpack.c.l.b16 %v315
    %v332 = vunpack.c.l.b16 %v316
    %v333 = vunpack.c.l.b16 %v317
    %v334 = vunpack.c.l.b16 %v318
    %v335 = vunpack.c.l.b16 %v319
    %v336 = vunpack.c.l.b16 %v320
    %v337 = vpack.c.b16 %v330, %v329
    %v338 = vpack.c.b16 %v332, %v331
    %v339 = vpack.c.b16 %v334, %v333
    %v340 = vpack.c.b16 %v336, %v335
    %vm345 = vcmask 523264
    %v347 = vsel %vm345, %v309, 0
    %v350 = vsel %vm345, %v310, 0
    %v353 = vsel %vm345, %v311, 0
    %v356 = vsel %vm345, %v312, 0
    %358 = vmatprep.subr.bf16.mxu0 0
    %359 = vmatpush1.bf16.msra.mxu0 %v337
    %360 = vmatprep.subr.bf16.mxu0 0
    %361 = vmatpush1.bf16.msra.mxu0 %v338
    %362 = vmatprep.subr.bf16.mxu0 0
    %363 = vmatpush1.bf16.msra.mxu0 %v339
    %364 = vmatprep.subr.bf16.mxu0 0
    %365 = vmatpush1.bf16.msra.mxu0 %v340
    %366 = vmatprep.subr.bf16.mxu0 0
    %367 = vmatpush1.bf16.msra.mxu0 0
    %368 = vmatprep.subr.bf16.mxu0 0
    %369 = vmatpush1.bf16.msra.mxu0 0
    %370 = vmatprep.subr.bf16.mxu0 0
    %371 = vmatpush1.bf16.msra.mxu0 0
    %372 = vmatprep.subr.bf16.mxu0 0
    %373 = vmatpush1.bf16.msra.mxu0 0
    %374 = vmatprep.subr.bf16.mxu0 0
    %375 = vmatpush1.bf16.msra.mxu0 0
    %376 = vmatprep.subr.bf16.mxu0 0
    %377 = vmatpush1.bf16.msra.mxu0 0
    %378 = vmatprep.subr.bf16.mxu0 0
    %379 = vmatpush1.bf16.msra.mxu0 0
    %380 = vmatprep.subr.bf16.mxu0 0
    %381 = vmatpush1.bf16.msra.mxu0 0
    %382 = vmatprep.subr.bf16.mxu0 0
    %383 = vmatpush1.bf16.msra.mxu0 0
    %384 = vmatprep.subr.bf16.mxu0 0
    %385 = vmatpush1.bf16.msra.mxu0 0
    %386 = vmatprep.subr.bf16.mxu0 0
    %387 = vmatpush1.bf16.msra.mxu0 0
    %388 = vmatprep.subr.bf16.mxu0 0
    %389 = vmatpush1.bf16.msra.mxu0 0
    %390 = vmatprep.mubr.bf16.mxu0 0
    %391 = vmatmul.mubr.bf16.gmra.mrb[0].mxu0 %v347
    %v392 = vpop.f32.mrb[0].mxu0
    %v393 = vadd.f32 0.0, %v392
    %v394 = vpop.f32.mrb[0].mxu0
    %v395 = vpop.f32.mrb[0].mxu0
    %v396 = vadd.f32 0.0, %v395
    %v397 = vpop.f32.mrb[0].mxu0
    %398 = vmatprep.mubr.bf16.mxu0 0
    %399 = vmatmul.mubr.bf16.gmra.mrb[0].mxu0 %v350
    %v400 = vpop.f32.mrb[0].mxu0
    %v401 = vadd.f32 0.0, %v400
    %v402 = vpop.f32.mrb[0].mxu0
    %v403 = vpop.f32.mrb[0].mxu0
    %v404 = vadd.f32 0.0, %v403
    %v405 = vpop.f32.mrb[0].mxu0
    %406 = vmatprep.mubr.bf16.mxu0 0
    %407 = vmatmul.mubr.bf16.gmra.mrb[0].mxu0 %v353
    %v408 = vpop.f32.mrb[0].mxu0
    %v409 = vadd.f32 0.0, %v408
    %v410 = vpop.f32.mrb[0].mxu0
    %v411 = vpop.f32.mrb[0].mxu0
    %v412 = vadd.f32 0.0, %v411
    %v413 = vpop.f32.mrb[0].mxu0
    %414 = vmatprep.mubr.bf16.mxu0 0
    %415 = vmatmul.mubr.bf16.gmra.mrb[0].mxu0 %v356
    %v416 = vpop.f32.mrb[0].mxu0
    %v417 = vadd.f32 0.0, %v416
    %v418 = vpop.f32.mrb[0].mxu0
    %v419 = vpop.f32.mrb[0].mxu0
    %v420 = vadd.f32 0.0, %v419
    %v421 = vpop.f32.mrb[0].mxu0
    %422 = vdwg.mxu0
    %v423 = vld [vmem:[%s8] sm:$0x1]
    %v425 = vlaneseq
    %v426 = vshrl.u32 %v425, 7
    %v427 = vsub.s32 0, %v426
    %v428 = vrot.slane %v423, %v427
    %v430 = vmul.f32 %v393, %v428
    %v431 = vmul.f32 %v396, %v428
    %v432 = vmul.f32 %v401, %v428
    %v433 = vmul.f32 %v404, %v428
    %v434 = vmul.f32 %v409, %v428
    %v435 = vmul.f32 %v412, %v428
    %v436 = vmul.f32 %v417, %v428
    %v437 = vmul.f32 %v420, %v428
    %v438 = vld [vmem:[%s9] sm:$0x1]
    %v440 = vlaneseq
    %v441 = vshrl.u32 %v440, 7
    %v442 = vsub.s32 0, %v441
    %v443 = vrot.slane %v438, %v442
    %v445 = vadd.f32 %v430, %v443
    %v446 = vadd.f32 %v431, %v443
    %v447 = vadd.f32 %v432, %v443
    %v448 = vadd.f32 %v433, %v443
    %v449 = vadd.f32 %v434, %v443
    %v450 = vadd.f32 %v435, %v443
    %v451 = vadd.f32 %v436, %v443
    %v452 = vadd.f32 %v437, %v443
    %453 = vst [vmem:[#allocation2] sm:$0xff] %v445
    %454 = vst [vmem:[#allocation2 + $0x8] sm:$0xff] %v446
    %455 = vst [vmem:[#allocation2 + $0x10] sm:$0xff] %v447
    %456 = vst [vmem:[#allocation2 + $0x18] sm:$0xff] %v448
    %457 = vst [vmem:[#allocation2 + $0x20] sm:$0xff] %v449
    %458 = vst [vmem:[#allocation2 + $0x28] sm:$0xff] %v450
    %459 = vst [vmem:[#allocation2 + $0x30] sm:$0xff] %v451
    %460 = vst [vmem:[#allocation2 + $0x38] sm:$0xff] %v452
    // Predicated region
    $region42: #{tpu_custom_call.1} parent=1 // pred_check
      _
    $region43: #{tpu_custom_call.1} parent=1 // pred_check_branch
      %462 = sbr.rel (0) target = $region45
    $region44: #{tpu_custom_call.1} parent=1 // pred_region
      %s464 = ssub.s32 1024, 1024
      %465 = vsyncadd [#allocation3], %s464
      %s466 = sshll.u32 [#allocation2], 4
      %s467 = int_to_ptr.vmem [resolvable:$true] %s466
      %472 = dma.vmem_to_hbm [thread:$0]  %s467, 1024, %s10, [#allocation3], 128, 128, 8
    $region45: #{tpu_custom_call.1} parent=1 // pred_fallthru
      _
    // Predicated region
    $region46: #{tpu_custom_call.1} parent=1 // pred_check
      _
    $region47: #{tpu_custom_call.1} parent=1 // pred_check_branch
      %474 = sbr.rel (0) target = $region49
    $region48: #{tpu_custom_call.1} parent=1 // pred_region
      %475 = dma.done [#allocation3], 1024
    $region49: #{tpu_custom_call.1} parent=1 // pred_fallthru
      _
    %476 = vsyncpa [#allocation3], 1

</llo_original>
